<compile_context>
chip_gen: v6e
topology: v6e:2x2x1
jax: 0.10.0
libtpu: 0.0.40
codegen_flags: <defaults>
</compile_context>

<pallas_src>
import functools

import jax
import jax.numpy as jnp
from jax.experimental import pallas as pl
from jax.experimental.pallas import tpu as pltpu

INPUT_SIZE = 16
HIDDEN = 64
OUTPUT_SIZE = 4
PACKW = 64        # lane width of packed weight/bias buffers (hidden width)
OUT_STORE = 8     # lanes actually written back per row (>= OUTPUT_SIZE)

# Row offsets of each layer inside the packed weight buffer (all multiples of
# 16 -> aligned with the bf16 sublane tiling).
_W1_OFF = 0                       # rows [  0, 16)
_W2_OFF = _W1_OFF + INPUT_SIZE    # rows [ 16, 80)
_W3_OFF = _W2_OFF + HIDDEN        # rows [ 80,144)
_W4_OFF = _W3_OFF + HIDDEN        # rows [144,208)
_W_ROWS = _W4_OFF + HIDDEN        # 208


def dqn_kernel(x_ref, w_ref, b_ref, o_ref):
    # Hoist the tiny bias rows (f32) off the per-layer critical path.
    b1 = b_ref[pl.ds(0, 1), :]
    b2 = b_ref[pl.ds(1, 1), :]
    b3 = b_ref[pl.ds(2, 1), :]
    b4 = b_ref[pl.ds(3, 1), :]

    # fc1 + relu: (tm, 16) @ (16, 64), bf16 operands, f32 accumulate.
    h = jnp.dot(x_ref[...].astype(jnp.bfloat16),
                w_ref[pl.ds(_W1_OFF, INPUT_SIZE), :],
                preferred_element_type=jnp.float32)
    h = jnp.maximum(h + b1, 0.0)

    # fc2 + relu: (tm, 64) @ (64, 64).
    h = jnp.dot(h.astype(jnp.bfloat16), w_ref[pl.ds(_W2_OFF, HIDDEN), :],
                preferred_element_type=jnp.float32)
    h = jnp.maximum(h + b2, 0.0)

    # fc3 + relu.
    h = jnp.dot(h.astype(jnp.bfloat16), w_ref[pl.ds(_W3_OFF, HIDDEN), :],
                preferred_element_type=jnp.float32)
    h = jnp.maximum(h + b3, 0.0)

    # fc4 (no activation); only cols [:4] of the 64-lane result are real.
    h = jnp.dot(h.astype(jnp.bfloat16), w_ref[pl.ds(_W4_OFF, HIDDEN), :],
                preferred_element_type=jnp.float32)
    h = h + b4
    o_ref[...] = h[:, :OUT_STORE].astype(o_ref.dtype)


def _round_up(n, m):
    return ((n + m - 1) // m) * m


def pack_params(params):
    """Pack w1..w4 (bf16) / b1..b4 (f32) into two contiguous buffers."""
    def pad_w(a, rows):
        out = jnp.zeros((rows, PACKW), jnp.float32)
        return out.at[: a.shape[0], : a.shape[1]].set(a)

    w_pack = jnp.concatenate(
        [pad_w(params["w1"], INPUT_SIZE),
         pad_w(params["w2"], HIDDEN),
         pad_w(params["w3"], HIDDEN),
         pad_w(params["w4"], HIDDEN)], axis=0).astype(jnp.bfloat16)   # [208, 64]

    b_pack = jnp.zeros((8, PACKW), jnp.float32)                        # [8, 64]
    b_pack = b_pack.at[0, :HIDDEN].set(params["b1"][0])
    b_pack = b_pack.at[1, :HIDDEN].set(params["b2"][0])
    b_pack = b_pack.at[2, :HIDDEN].set(params["b3"][0])
    b_pack = b_pack.at[3, :OUTPUT_SIZE].set(params["b4"][0])
    return w_pack, b_pack


@functools.partial(jax.jit, static_argnames=("tm",))
def dqn_forward(x, w_pack, b_pack, *, tm=1024):
    """x: [B, INPUT_SIZE] f32 -> [B, OUTPUT_SIZE] f32."""
    B = x.shape[0]
    # Clamp the tile so (a) tiny batches use one 8-row-aligned tile and
    # (b) larger batches always produce >= 2 grid tiles (v7x dual-TC sharding).
    half = _round_up(max(-(-B // 2), 1), 8)
    tm = max(8, min(tm, half))
    Bp = _round_up(B, tm)
    if Bp != B:
        x = jnp.pad(x, ((0, Bp - B), (0, 0)))

    flops = 2 * Bp * (INPUT_SIZE * HIDDEN + 2 * HIDDEN * HIDDEN
                      + HIDDEN * OUTPUT_SIZE)
    bytes_accessed = (Bp * INPUT_SIZE * 4 + Bp * OUT_STORE * 4
                      + _W_ROWS * PACKW * 2 + 8 * PACKW * 4)

    out = pl.pallas_call(
        dqn_kernel,
        out_shape=jax.ShapeDtypeStruct((Bp, OUT_STORE), jnp.float32),
        grid=(Bp // tm,),
        in_specs=[
            pl.BlockSpec((tm, INPUT_SIZE), lambda i: (i, 0)),    # x row tile
            pl.BlockSpec((_W_ROWS, PACKW), lambda i: (0, 0)),    # resident weights
            pl.BlockSpec((8, PACKW), lambda i: (0, 0)),          # resident biases
        ],
        out_specs=pl.BlockSpec((tm, OUT_STORE), lambda i: (i, 0)),
        compiler_params=pltpu.CompilerParams(
            dimension_semantics=("parallel",)),
        cost_estimate=pl.CostEstimate(flops=flops, transcendentals=0,
                                      bytes_accessed=bytes_accessed),
    )(x, w_pack, b_pack)
    return out[:B, :OUTPUT_SIZE]


def init_params(key):
    """Deterministic synthetic init (PyTorch-Linear-like bound 1/sqrt(fan_in))."""
    dims = [(INPUT_SIZE, HIDDEN), (HIDDEN, HIDDEN), (HIDDEN, HIDDEN),
            (HIDDEN, OUTPUT_SIZE)]
    params = {}
    keys = jax.random.split(key, 2 * len(dims))
    for i, (fan_in, fan_out) in enumerate(dims):
        bound = 1.0 / (fan_in ** 0.5)
        params[f"w{i+1}"] = jax.random.uniform(
            keys[2 * i], (fan_in, fan_out), jnp.float32, -bound, bound)
        params[f"b{i+1}"] = jax.random.uniform(
            keys[2 * i + 1], (1, fan_out), jnp.float32, -bound, bound)
    return params


def reference_forward_f32(x, params):
    h = jnp.maximum(x @ params["w1"] + params["b1"], 0.0)
    h = jnp.maximum(h @ params["w2"] + params["b2"], 0.0)
    h = jnp.maximum(h @ params["w3"] + params["b3"], 0.0)
    return h @ params["w4"] + params["b4"]


def reference_forward_bf16(x, params):
    def mm(a, w):
        return jnp.dot(a.astype(jnp.bfloat16), w.astype(jnp.bfloat16),
                       preferred_element_type=jnp.float32)
    h = jnp.maximum(mm(x, params["w1"]) + params["b1"], 0.0)
    h = jnp.maximum(mm(h, params["w2"]) + params["b2"], 0.0)
    h = jnp.maximum(mm(h, params["w3"]) + params["b3"], 0.0)
    return mm(h, params["w4"]) + params["b4"]


if __name__ == "__main__":
    key = jax.random.PRNGKey(0)
    pkey, xkey, xkey2 = jax.random.split(key, 3)
    params = init_params(pkey)
    w_pack, b_pack = pack_params(params)

    # Small batch (single 8-row tile).
    batch = 8
    x = jax.random.uniform(xkey, (batch, INPUT_SIZE), jnp.float32)
    out = jax.block_until_ready(dqn_forward(x, w_pack, b_pack))
    assert out.shape == (batch, OUTPUT_SIZE), out.shape
    assert jnp.allclose(out, reference_forward_bf16(x, params),
                        atol=1e-2, rtol=1e-2)
    assert jnp.allclose(out, reference_forward_f32(x, params),
                        atol=1e-1, rtol=1e-1)

    # Larger batch exercising the parallel batch grid (>= 2 tiles).
    batch2 = 512
    x2 = jax.random.uniform(xkey2, (batch2, INPUT_SIZE), jnp.float32)
    out2 = jax.block_until_ready(dqn_forward(x2, w_pack, b_pack))
    assert out2.shape == (batch2, OUTPUT_SIZE), out2.shape
    assert jnp.allclose(out2, reference_forward_bf16(x2, params),
                        atol=1e-2, rtol=1e-2)
    assert jnp.allclose(out2, reference_forward_f32(x2, params),
                        atol=1e-1, rtol=1e-1)

    print("KERNEL_OK")
</pallas_src>

<mosaic_0001>
module attributes {stable_mosaic.version = 11 : i64} {
  func.func @dqn_kernel(%arg0: i32, %arg1: memref<8x16xf32, #tpu.memory_space<vmem>>, %arg2: memref<208x64xbf16, #tpu.memory_space<vmem>>, %arg3: memref<8x64xf32, #tpu.memory_space<vmem>>, %arg4: memref<8x8xf32, #tpu.memory_space<vmem>>) attributes {dimension_semantics = [#tpu.dimension_semantics<parallel>], iteration_bounds = array<i64: 1>, scalar_prefetch = 0 : i64, scratch_operands = 0 : i64, tpu.core_type = #tpu.core_type<tc>, window_params = [{transform_indices = @transform_0, window_bounds = array<i64: 8, 16>}, {pipeline_mode = #tpu.pipeline_mode<synchronous>, transform_indices = @transform_1, window_bounds = array<i64: 208, 64>}, {pipeline_mode = #tpu.pipeline_mode<synchronous>, transform_indices = @transform_2, window_bounds = array<i64: 8, 64>}, {transform_indices = @transform_3, window_bounds = array<i64: 8, 8>}]} {
    %c0 = arith.constant 0 : index
    %c0_0 = arith.constant 0 : index
    %0 = vector.load %arg3[%c0, %c0_0] : memref<8x64xf32, #tpu.memory_space<vmem>>, vector<1x64xf32>
    %c1 = arith.constant 1 : index
    %c0_1 = arith.constant 0 : index
    %1 = vector.load %arg3[%c1, %c0_1] : memref<8x64xf32, #tpu.memory_space<vmem>>, vector<1x64xf32>
    %c2 = arith.constant 2 : index
    %c0_2 = arith.constant 0 : index
    %2 = vector.load %arg3[%c2, %c0_2] : memref<8x64xf32, #tpu.memory_space<vmem>>, vector<1x64xf32>
    %c3 = arith.constant 3 : index
    %c0_3 = arith.constant 0 : index
    %3 = vector.load %arg3[%c3, %c0_3] : memref<8x64xf32, #tpu.memory_space<vmem>>, vector<1x64xf32>
    %c0_4 = arith.constant 0 : index
    %c0_5 = arith.constant 0 : index
    %4 = vector.load %arg1[%c0_4, %c0_5] : memref<8x16xf32, #tpu.memory_space<vmem>>, vector<8x16xf32>
    %5 = arith.truncf %4 : vector<8x16xf32> to vector<8x16xbf16>
    %c0_6 = arith.constant 0 : index
    %c0_7 = arith.constant 0 : index
    %6 = vector.load %arg2[%c0_6, %c0_7] : memref<208x64xbf16, #tpu.memory_space<vmem>>, vector<16x64xbf16>
    %cst = arith.constant dense<0.000000e+00> : vector<8x64xf32>
    %7 = tpu.matmul %5, %6, %cst {dimension_numbers = #tpu.dot_dimension_numbers<[1], [0], [0], [1], [0, 0, 1, 1], [], []>} : vector<8x16xbf16>, vector<16x64xbf16>, vector<8x64xf32> -> vector<8x64xf32>
    %8 = vector.broadcast %0 : vector<1x64xf32> to vector<8x64xf32>
    %9 = arith.addf %7, %8 : vector<8x64xf32>
    %cst_8 = arith.constant 0.000000e+00 : f32
    %10 = vector.broadcast %cst_8 : f32 to vector<8x64xf32>
    %11 = arith.maximumf %9, %10 : vector<8x64xf32>
    %12 = arith.truncf %11 : vector<8x64xf32> to vector<8x64xbf16>
    %c16 = arith.constant 16 : index
    %c0_9 = arith.constant 0 : index
    %13 = vector.load %arg2[%c16, %c0_9] : memref<208x64xbf16, #tpu.memory_space<vmem>>, vector<64x64xbf16>
    %cst_10 = arith.constant dense<0.000000e+00> : vector<8x64xf32>
    %14 = tpu.matmul %12, %13, %cst_10 {dimension_numbers = #tpu.dot_dimension_numbers<[1], [0], [0], [1], [0, 0, 1, 1], [], []>} : vector<8x64xbf16>, vector<64x64xbf16>, vector<8x64xf32> -> vector<8x64xf32>
    %15 = vector.broadcast %1 : vector<1x64xf32> to vector<8x64xf32>
    %16 = arith.addf %14, %15 : vector<8x64xf32>
    %cst_11 = arith.constant 0.000000e+00 : f32
    %17 = vector.broadcast %cst_11 : f32 to vector<8x64xf32>
    %18 = arith.maximumf %16, %17 : vector<8x64xf32>
    %19 = arith.truncf %18 : vector<8x64xf32> to vector<8x64xbf16>
    %c80 = arith.constant 80 : index
    %c0_12 = arith.constant 0 : index
    %20 = vector.load %arg2[%c80, %c0_12] : memref<208x64xbf16, #tpu.memory_space<vmem>>, vector<64x64xbf16>
    %cst_13 = arith.constant dense<0.000000e+00> : vector<8x64xf32>
    %21 = tpu.matmul %19, %20, %cst_13 {dimension_numbers = #tpu.dot_dimension_numbers<[1], [0], [0], [1], [0, 0, 1, 1], [], []>} : vector<8x64xbf16>, vector<64x64xbf16>, vector<8x64xf32> -> vector<8x64xf32>
    %22 = vector.broadcast %2 : vector<1x64xf32> to vector<8x64xf32>
    %23 = arith.addf %21, %22 : vector<8x64xf32>
    %cst_14 = arith.constant 0.000000e+00 : f32
    %24 = vector.broadcast %cst_14 : f32 to vector<8x64xf32>
    %25 = arith.maximumf %23, %24 : vector<8x64xf32>
    %26 = arith.truncf %25 : vector<8x64xf32> to vector<8x64xbf16>
    %c144 = arith.constant 144 : index
    %c0_15 = arith.constant 0 : index
    %27 = vector.load %arg2[%c144, %c0_15] : memref<208x64xbf16, #tpu.memory_space<vmem>>, vector<64x64xbf16>
    %cst_16 = arith.constant dense<0.000000e+00> : vector<8x64xf32>
    %28 = tpu.matmul %26, %27, %cst_16 {dimension_numbers = #tpu.dot_dimension_numbers<[1], [0], [0], [1], [0, 0, 1, 1], [], []>} : vector<8x64xbf16>, vector<64x64xbf16>, vector<8x64xf32> -> vector<8x64xf32>
    %29 = vector.broadcast %3 : vector<1x64xf32> to vector<8x64xf32>
    %30 = arith.addf %28, %29 : vector<8x64xf32>
    %31 = vector.extract_strided_slice %30 {offsets = [0, 0], sizes = [8, 8], strides = [1, 1]} : vector<8x64xf32> to vector<8x8xf32>
    %c0_17 = arith.constant 0 : index
    %c0_18 = arith.constant 0 : index
    %32 = vector.load %arg4[%c0_17, %c0_18] : memref<8x8xf32, #tpu.memory_space<vmem>>, vector<8x8xf32>
    tpu.vector_store %arg4[%c0_17, %c0_18], %31 {strides = array<i32>} : memref<8x8xf32, #tpu.memory_space<vmem>>, vector<8x8xf32>,
    return
  }
  func.func @transform_0(%arg0: i32) -> (i32, i32) {
    %c0_i32 = arith.constant 0 : i32
    %c0_i32_0 = arith.constant 0 : i32
    return %arg0, %c0_i32 : i32, i32
  }
  func.func @transform_1(%arg0: i32) -> (i32, i32) {
    %c0_i32 = arith.constant 0 : i32
    %c0_i32_0 = arith.constant 0 : i32
    %c0_i32_1 = arith.constant 0 : i32
    return %c0_i32, %c0_i32_0 : i32, i32
  }
  func.func @transform_2(%arg0: i32) -> (i32, i32) {
    %c0_i32 = arith.constant 0 : i32
    %c0_i32_0 = arith.constant 0 : i32
    %c0_i32_1 = arith.constant 0 : i32
    return %c0_i32, %c0_i32_0 : i32, i32
  }
  func.func @transform_3(%arg0: i32) -> (i32, i32) {
    %c0_i32 = arith.constant 0 : i32
    %c0_i32_0 = arith.constant 0 : i32
    return %arg0, %c0_i32 : i32, i32
  }
}

</mosaic_0001>

<llo_original>
// kernel: dqn_forward.1
$region0: #{dqn_forward.1}
  #allocation0 [shape = 'u32[]', space=smem, size = 0x4, offset = 0x4, fixed_abs, tag = 'smem constant byte address 0x4 - core index']
  #allocation1 [shape = 'u32[144,128]{1,0:T(1,128)}', space=vmem, size = 0x12000, scoped, tag = 'internal scratch']
  %s0 = inlined_call_operand.vmem [shape: f32[8,16], index: 0, kind: input, shape index: {}]
  %s1 = inlined_call_operand.vmem [shape: bf16[208,64], index: 1, kind: input, shape index: {}]
  %s2 = inlined_call_operand.vmem [shape: f32[8,64], index: 2, kind: input, shape index: {}]
  %s3 = inlined_call_operand.vmem [shape: f32[8,8], index: 3, kind: output, shape index: {}]
  %s4 = sld [smem:[#allocation0]]
  $region22: #{dqn_forward.1} parent=0
    _
  %s6 = ssub.s32 1, %s4
  %s7 = scalar_select 0, %s6, %s4
  // Predicated region
  $region2: #{dqn_forward.1} parent=0 // pred_check
    _
  $region3: #{dqn_forward.1} parent=0 // pred_check_branch
    %9 = sbr.rel (0) target = $region5
  $region4: #{dqn_forward.1} parent=0 // pred_region
    _
  $region5: #{dqn_forward.1} parent=0 // pred_fallthru
    _
  // Predicated region
  $region6: #{dqn_forward.1} parent=0 // pred_check
    _
  $region7: #{dqn_forward.1} parent=0 // pred_check_branch
    %11 = sbr.rel (0) target = $region9
  $region8: #{dqn_forward.1} parent=0 // pred_region
    _
  $region9: #{dqn_forward.1} parent=0 // pred_fallthru
    _
  // Predicated region
  $region10: #{dqn_forward.1} parent=0 // pred_check
    _
  $region11: #{dqn_forward.1} parent=0 // pred_check_branch
    %13 = sbr.rel (0) target = $region13
  $region12: #{dqn_forward.1} parent=0 // pred_region
    _
  $region13: #{dqn_forward.1} parent=0 // pred_fallthru
    _
  %v15 = vld [vmem:[%s2] sm:$0x1]
  %v16 = vld [vmem:[%s2 + $0x1] sm:$0x1]
  %v17 = vld [vmem:[%s2 + $0x2] sm:$0x1]
  %v18 = vld [vmem:[%s2 + $0x3] sm:$0x1]
  %v19 = vld [vmem:[%s0] sm:$0xff]
  %v20 = vpack.c.bf16 %v19, %v19
  %v21 = vld [vmem:[%s1] sm:$0xf]
  %v22 = vld [vmem:[%s1 + $0x4] sm:$0xf]
  %v23 = vlaneseq
  %v24 = vshrl.u32 %v23, 7
  %v25 = vsub.s32 0, %v24
  %v26 = vrot.slane %v15, %v25
  %v29 = vunpack.c.l.b16 %v21
  %v30 = vunpack.c.l.b16 %v22
  %v31 = vpack.c.b16 %v30, %v29
  %vm33 = vcmask 130048
  %v35 = vsel %vm33, %v20, 0
  %37 = vmatprep.subr.bf16.mxu0 0
  %38 = vmatpush1.bf16.msra.mxu0 0
  %39 = vmatprep.subr.bf16.mxu0 0
  %40 = vmatpush1.bf16.msra.mxu0 0
  %41 = vmatprep.subr.bf16.mxu0 0
  %42 = vmatpush1.bf16.msra.mxu0 0
  %43 = vmatprep.subr.bf16.mxu0 0
  %44 = vmatpush1.bf16.msra.mxu0 0
  %45 = vmatprep.subr.bf16.mxu0 0
  %46 = vmatpush1.bf16.msra.mxu0 0
  %47 = vmatprep.subr.bf16.mxu0 0
  %48 = vmatpush1.bf16.msra.mxu0 0
  %49 = vmatprep.subr.bf16.mxu0 0
  %50 = vmatpush1.bf16.msra.mxu0 0
  %51 = vmatprep.subr.bf16.mxu0 0
  %52 = vmatpush1.bf16.msra.mxu0 %v31
  %53 = vmatprep.subr.bf16.mxu0 0
  %54 = vmatpush2.bf16.msra.mxu0 0
  %55 = vmatprep.subr.bf16.mxu0 0
  %56 = vmatpush2.bf16.msra.mxu0 0
  %57 = vmatprep.subr.bf16.mxu0 0
  %58 = vmatpush2.bf16.msra.mxu0 0
  %59 = vmatprep.subr.bf16.mxu0 0
  %60 = vmatpush2.bf16.msra.mxu0 0
  %61 = vmatprep.subr.bf16.mxu0 0
  %62 = vmatpush2.bf16.msra.mxu0 0
  %63 = vmatprep.subr.bf16.mxu0 0
  %64 = vmatpush2.bf16.msra.mxu0 0
  %65 = vmatprep.subr.bf16.mxu0 0
  %66 = vmatpush2.bf16.msra.mxu0 0
  %67 = vmatprep.subr.bf16.mxu0 0
  %68 = vmatpush2.bf16.msra.mxu0 0
  %69 = vmatprep.mubr.bf16.mxu0 0
  %70 = vmatmul.mubr.bf16.gmra.mxu0 %v35
  %v71 = vpop.f32.mrf.mxu0
  %v72 = vadd.f32 %v26, %v71
  %v73 = vpop.f32.mrf.mxu0
  %v74 = vpop.f32.mrf.mxu0
  %v75 = vpop.f32.mrf.mxu0
  %76 = vdwg.mxu0
  %v77 = vmax.f32 %v72, 0.0
  %v78 = vpack.c.bf16 %v77, %v77
  %v79 = vld [vmem:[%s1 + $0x8] sm:$0xf]
  %v80 = vld [vmem:[%s1 + $0xc] sm:$0xf]
  %v81 = vld [vmem:[%s1 + $0x10] sm:$0xf]
  %v82 = vld [vmem:[%s1 + $0x14] sm:$0xf]
  %v83 = vld [vmem:[%s1 + $0x18] sm:$0xf]
  %v84 = vld [vmem:[%s1 + $0x1c] sm:$0xf]
  %v85 = vld [vmem:[%s1 + $0x20] sm:$0xf]
  %v86 = vld [vmem:[%s1 + $0x24] sm:$0xf]
  %v87 = vlaneseq
  %v88 = vshrl.u32 %v87, 7
  %v89 = vsub.s32 0, %v88
  %v90 = vrot.slane %v16, %v89
  %v99 = vunpack.c.l.b16 %v79
  %v100 = vunpack.c.l.b16 %v80
  %v101 = vunpack.c.l.b16 %v81
  %v102 = vunpack.c.l.b16 %v82
  %v103 = vunpack.c.l.b16 %v83
  %v104 = vunpack.c.l.b16 %v84
  %v105 = vunpack.c.l.b16 %v85
  %v106 = vunpack.c.l.b16 %v86
  %v107 = vpack.c.b16 %v100, %v99
  %v108 = vpack.c.b16 %v102, %v101
  %v109 = vpack.c.b16 %v104, %v103
  %v110 = vpack.c.b16 %v106, %v105
  %vm115 = vcmask 523264
  %v117 = vsel %vm115, %v78, 0
  %119 = vmatprep.subr.bf16.mxu0 0
  %120 = vmatpush1.bf16.msra.mxu0 0
  %121 = vmatprep.subr.bf16.mxu0 0
  %122 = vmatpush1.bf16.msra.mxu0 0
  %123 = vmatprep.subr.bf16.mxu0 0
  %124 = vmatpush1.bf16.msra.mxu0 0
  %125 = vmatprep.subr.bf16.mxu0 0
  %126 = vmatpush1.bf16.msra.mxu0 0
  %127 = vmatprep.subr.bf16.mxu0 0
  %128 = vmatpush1.bf16.msra.mxu0 %v110
  %129 = vmatprep.subr.bf16.mxu0 0
  %130 = vmatpush1.bf16.msra.mxu0 %v109
  %131 = vmatprep.subr.bf16.mxu0 0
  %132 = vmatpush1.bf16.msra.mxu0 %v108
  %133 = vmatprep.subr.bf16.mxu0 0
  %134 = vmatpush1.bf16.msra.mxu0 %v107
  %135 = vmatprep.subr.bf16.mxu0 0
  %136 = vmatpush2.bf16.msra.mxu0 0
  %137 = vmatprep.subr.bf16.mxu0 0
  %138 = vmatpush2.bf16.msra.mxu0 0
  %139 = vmatprep.subr.bf16.mxu0 0
  %140 = vmatpush2.bf16.msra.mxu0 0
  %141 = vmatprep.subr.bf16.mxu0 0
  %142 = vmatpush2.bf16.msra.mxu0 0
  %143 = vmatprep.subr.bf16.mxu0 0
  %144 = vmatpush2.bf16.msra.mxu0 0
  %145 = vmatprep.subr.bf16.mxu0 0
  %146 = vmatpush2.bf16.msra.mxu0 0
  %147 = vmatprep.subr.bf16.mxu0 0
  %148 = vmatpush2.bf16.msra.mxu0 0
  %149 = vmatprep.subr.bf16.mxu0 0
  %150 = vmatpush2.bf16.msra.mxu0 0
  %151 = vmatprep.mubr.bf16.mxu0 0
  %152 = vmatmul.mubr.bf16.gmra.mxu0 %v117
  %v153 = vpop.f32.mrf.mxu0
  %v154 = vadd.f32 %v90, %v153
  %v155 = vpop.f32.mrf.mxu0
  %v156 = vpop.f32.mrf.mxu0
  %v157 = vpop.f32.mrf.mxu0
  %158 = vdwg.mxu0
  %v159 = vmax.f32 %v154, 0.0
  %v160 = vpack.c.bf16 %v159, %v159
  %v161 = vld [vmem:[%s1 + $0x28] sm:$0xf]
  %v162 = vld [vmem:[%s1 + $0x2c] sm:$0xf]
  %v163 = vld [vmem:[%s1 + $0x30] sm:$0xf]
  %v164 = vld [vmem:[%s1 + $0x34] sm:$0xf]
  %v165 = vld [vmem:[%s1 + $0x38] sm:$0xf]
  %v166 = vld [vmem:[%s1 + $0x3c] sm:$0xf]
  %v167 = vld [vmem:[%s1 + $0x40] sm:$0xf]
  %v168 = vld [vmem:[%s1 + $0x44] sm:$0xf]
  %v169 = vlaneseq
  %v170 = vshrl.u32 %v169, 7
  %v171 = vsub.s32 0, %v170
  %v172 = vrot.slane %v17, %v171
  %v181 = vunpack.c.l.b16 %v161
  %v182 = vunpack.c.l.b16 %v162
  %v183 = vunpack.c.l.b16 %v163
  %v184 = vunpack.c.l.b16 %v164
  %v185 = vunpack.c.l.b16 %v165
  %v186 = vunpack.c.l.b16 %v166
  %v187 = vunpack.c.l.b16 %v167
  %v188 = vunpack.c.l.b16 %v168
  %v189 = vpack.c.b16 %v182, %v181
  %v190 = vpack.c.b16 %v184, %v183
  %v191 = vpack.c.b16 %v186, %v185
  %v192 = vpack.c.b16 %v188, %v187
  %v198 = vsel %vm115, %v160, 0
  %200 = vmatprep.subr.bf16.mxu0 0
  %201 = vmatpush1.bf16.msra.mxu0 0
  %202 = vmatprep.subr.bf16.mxu0 0
  %203 = vmatpush1.bf16.msra.mxu0 0
  %204 = vmatprep.subr.bf16.mxu0 0
  %205 = vmatpush1.bf16.msra.mxu0 0
  %206 = vmatprep.subr.bf16.mxu0 0
  %207 = vmatpush1.bf16.msra.mxu0 0
  %208 = vmatprep.subr.bf16.mxu0 0
  %209 = vmatpush1.bf16.msra.mxu0 %v192
  %210 = vmatprep.subr.bf16.mxu0 0
  %211 = vmatpush1.bf16.msra.mxu0 %v191
  %212 = vmatprep.subr.bf16.mxu0 0
  %213 = vmatpush1.bf16.msra.mxu0 %v190
  %214 = vmatprep.subr.bf16.mxu0 0
  %215 = vmatpush1.bf16.msra.mxu0 %v189
  %216 = vmatprep.subr.bf16.mxu0 0
  %217 = vmatpush2.bf16.msra.mxu0 0
  %218 = vmatprep.subr.bf16.mxu0 0
  %219 = vmatpush2.bf16.msra.mxu0 0
  %220 = vmatprep.subr.bf16.mxu0 0
  %221 = vmatpush2.bf16.msra.mxu0 0
  %222 = vmatprep.subr.bf16.mxu0 0
  %223 = vmatpush2.bf16.msra.mxu0 0
  %224 = vmatprep.subr.bf16.mxu0 0
  %225 = vmatpush2.bf16.msra.mxu0 0
  %226 = vmatprep.subr.bf16.mxu0 0
  %227 = vmatpush2.bf16.msra.mxu0 0
  %228 = vmatprep.subr.bf16.mxu0 0
  %229 = vmatpush2.bf16.msra.mxu0 0
  %230 = vmatprep.subr.bf16.mxu0 0
  %231 = vmatpush2.bf16.msra.mxu0 0
  %232 = vmatprep.mubr.bf16.mxu0 0
  %233 = vmatmul.mubr.bf16.gmra.mxu0 %v198
  %v234 = vpop.f32.mrf.mxu0
  %v235 = vadd.f32 %v172, %v234
  %v236 = vpop.f32.mrf.mxu0
  %v237 = vpop.f32.mrf.mxu0
  %v238 = vpop.f32.mrf.mxu0
  %239 = vdwg.mxu0
  %v240 = vmax.f32 %v235, 0.0
  %v241 = vpack.c.bf16 %v240, %v240
  %v242 = vld [vmem:[%s1 + $0x48] sm:$0xf]
  %v243 = vld [vmem:[%s1 + $0x4c] sm:$0xf]
  %v244 = vld [vmem:[%s1 + $0x50] sm:$0xf]
  %v245 = vld [vmem:[%s1 + $0x54] sm:$0xf]
  %v246 = vld [vmem:[%s1 + $0x58] sm:$0xf]
  %v247 = vld [vmem:[%s1 + $0x5c] sm:$0xf]
  %v248 = vld [vmem:[%s1 + $0x60] sm:$0xf]
  %v249 = vld [vmem:[%s1 + $0x64] sm:$0xf]
  %v250 = vlaneseq
  %v251 = vshrl.u32 %v250, 7
  %v252 = vsub.s32 0, %v251
  %v253 = vrot.slane %v18, %v252
  %v262 = vunpack.c.l.b16 %v242
  %v263 = vunpack.c.l.b16 %v243
  %v264 = vunpack.c.l.b16 %v244
  %v265 = vunpack.c.l.b16 %v245
  %v266 = vunpack.c.l.b16 %v246
  %v267 = vunpack.c.l.b16 %v247
  %v268 = vunpack.c.l.b16 %v248
  %v269 = vunpack.c.l.b16 %v249
  %v270 = vpack.c.b16 %v263, %v262
  %v271 = vpack.c.b16 %v265, %v264
  %v272 = vpack.c.b16 %v267, %v266
  %v273 = vpack.c.b16 %v269, %v268
  %v279 = vsel %vm115, %v241, 0
  %281 = vmatprep.subr.bf16.mxu0 0
  %282 = vmatpush1.bf16.msra.mxu0 0
  %283 = vmatprep.subr.bf16.mxu0 0
  %284 = vmatpush1.bf16.msra.mxu0 0
  %285 = vmatprep.subr.bf16.mxu0 0
  %286 = vmatpush1.bf16.msra.mxu0 0
  %287 = vmatprep.subr.bf16.mxu0 0
  %288 = vmatpush1.bf16.msra.mxu0 0
  %289 = vmatprep.subr.bf16.mxu0 0
  %290 = vmatpush1.bf16.msra.mxu0 %v273
  %291 = vmatprep.subr.bf16.mxu0 0
  %292 = vmatpush1.bf16.msra.mxu0 %v272
  %293 = vmatprep.subr.bf16.mxu0 0
  %294 = vmatpush1.bf16.msra.mxu0 %v271
  %295 = vmatprep.subr.bf16.mxu0 0
  %296 = vmatpush1.bf16.msra.mxu0 %v270
  %297 = vmatprep.subr.bf16.mxu0 0
  %298 = vmatpush2.bf16.msra.mxu0 0
  %299 = vmatprep.subr.bf16.mxu0 0
  %300 = vmatpush2.bf16.msra.mxu0 0
  %301 = vmatprep.subr.bf16.mxu0 0
  %302 = vmatpush2.bf16.msra.mxu0 0
  %303 = vmatprep.subr.bf16.mxu0 0
  %304 = vmatpush2.bf16.msra.mxu0 0
  %305 = vmatprep.subr.bf16.mxu0 0
  %306 = vmatpush2.bf16.msra.mxu0 0
  %307 = vmatprep.subr.bf16.mxu0 0
  %308 = vmatpush2.bf16.msra.mxu0 0
  %309 = vmatprep.subr.bf16.mxu0 0
  %310 = vmatpush2.bf16.msra.mxu0 0
  %311 = vmatprep.subr.bf16.mxu0 0
  %312 = vmatpush2.bf16.msra.mxu0 0
  %313 = vmatprep.mubr.bf16.mxu0 0
  %314 = vmatmul.mubr.bf16.gmra.mxu0 %v279
  %v315 = vpop.f32.mrf.mxu0
  %v316 = vadd.f32 %v253, %v315
  %v317 = vpop.f32.mrf.mxu0
  %v318 = vpop.f32.mrf.mxu0
  %v319 = vpop.f32.mrf.mxu0
  %320 = vdwg.mxu0
  %vm321 = vcmask 64512
  %322 = vst.msk [vmem:[%s3] sm:$0xff] %vm321, %v316
  // Predicated region
  $region14: #{dqn_forward.1} parent=0 // pred_check
    _
  $region15: #{dqn_forward.1} parent=0 // pred_check_branch
    %324 = sbr.rel (0) target = $region17
  $region16: #{dqn_forward.1} parent=0 // pred_region
    _
  $region17: #{dqn_forward.1} parent=0 // pred_fallthru
    _
  // Predicated region
  $region18: #{dqn_forward.1} parent=0 // pred_check
    _
  $region19: #{dqn_forward.1} parent=0 // pred_check_branch
    %326 = sbr.rel (0) target = $region21
  $region20: #{dqn_forward.1} parent=0 // pred_region
    _
  $region21: #{dqn_forward.1} parent=0 // pred_fallthru
    _

</llo_original>
